<compile_context>
chip_gen: v6e
topology: v6e:2x2x1
jax: 0.10.0
libtpu: 0.0.40
codegen_flags: <defaults>
</compile_context>

<pallas_src>
import jax
import jax.numpy as jnp
from jax.experimental import pallas as pl
from jax.experimental.pallas import tpu as pltpu


def _linear_kernel(x_ref, w_ref, b_ref, o_ref):
    # x_ref: (C_in, tm)   w_ref: (C_out, C_in)   b_ref: (C_out, 1)   o_ref: (C_out, tm)
    # K = C_in is tiny so the MXU is barely utilized, but the kernel is HBM /
    # step-overhead bound at these channel counts; f32 accumulation preserves
    # Conv2d numerics.
    acc = jnp.dot(w_ref[...], x_ref[...], preferred_element_type=jnp.float32)
    o_ref[...] = (acc + b_ref[...]).astype(o_ref.dtype)


def _round_up(v, mult):
    return ((v + mult - 1) // mult) * mult


def linear_1x1(x_cnhw, weight, bias, *, tm=65536):
    """x_cnhw: (C_in, N, H, W); weight: (C_out, C_in); bias: (C_out,) -> (C_out, N, H, W)."""
    c_in, n, h, w = x_cnhw.shape
    c_out = weight.shape[0]
    m = n * h * w

    # Free, contiguous reshapes (no HBM transpose passes).
    x_cm = x_cnhw.reshape(c_in, m)
    b_col = bias.reshape(c_out, 1)

    # --- Tile sizing ----------------------------------------------------------
    # 1) Round caller tm down to a multiple of 128 (lane width); floor at 128.
    tm = max(128, (int(tm) // 128) * 128)

    # 2) Clamp tm so the double-buffered VMEM footprint stays well under every
    #    generation's scoped default (v5e 16 MiB is the tightest).  The sublane
    #    axis of each block pads up to a multiple of 8 (f32), so a (4, tm) x
    #    tile really costs 8*tm*4 bytes.
    bytes_per_col = 2 * (_round_up(c_in, 8) + _round_up(c_out, 8)) * 4  # 2x = double-buffered
    vmem_budget = 12 << 20
    tm_cap = max(128, (vmem_budget // bytes_per_col) // 128 * 128)
    tm = min(tm, tm_cap)

    # 3) Even out the grid: equal-size 128-aligned tiles; prefer an even tile
    #    count so the "parallel" M axis splits cleanly across v7x's two TCs.
    if m <= tm:
        tm_eff = m  # single full-extent block is always layout-legal
    else:
        num_tiles = pl.cdiv(m, tm)
        if num_tiles > 1 and num_tiles % 2 == 1:
            num_tiles += 1
        tm_eff = min(tm, _round_up(pl.cdiv(m, num_tiles), 128))
    grid = (pl.cdiv(m, tm_eff),)

    out_cm = pl.pallas_call(
        _linear_kernel,
        out_shape=jax.ShapeDtypeStruct((c_out, m), x_cnhw.dtype),
        grid_spec=pltpu.PrefetchScalarGridSpec(
            num_scalar_prefetch=0,
            grid=grid,
            in_specs=[
                pl.BlockSpec((c_in, tm_eff), lambda i: (0, i)),   # x tile: channels x lanes
                pl.BlockSpec((c_out, c_in), lambda i: (0, 0)),    # tiny weight, resident
                pl.BlockSpec((c_out, 1), lambda i: (0, 0)),       # bias column, resident
            ],
            out_specs=pl.BlockSpec((c_out, tm_eff), lambda i: (0, i)),
        ),
        compiler_params=pltpu.CompilerParams(
            dimension_semantics=("parallel",)),   # shards M across both TCs on v7x
    )(x_cm, weight, b_col)

    # Free contiguous reshape back to the PyTorch output layout (C_out, N, H, W).
    return out_cm.reshape(c_out, n, h, w)


if __name__ == "__main__":
    c_in, c_out = 4, 8
    n, h, w = 2, 16, 16

    key = jax.random.PRNGKey(0)
    kx, kw, kb = jax.random.split(key, 3)

    # Deterministic synthetic parameters (Conv2d(c_in, c_out, 1) -> weight (c_out, c_in, 1, 1)).
    bound = 1.0 / (c_in ** 0.5)
    weight = jax.random.uniform(kw, (c_out, c_in), jnp.float32, -bound, bound)
    bias = jax.random.uniform(kb, (c_out,), jnp.float32, -bound, bound)

    # Input in the PyTorch-forward layout: (C_in, N, H, W).
    x = jax.random.normal(kx, (c_in, n, h, w), jnp.float32)

    out = linear_1x1(x, weight, bias)
    out = jax.block_until_ready(out)

    # Pure-JAX reference of the same semantics.
    ref = jnp.einsum("oc,cnhw->onhw", weight, x) + bias[:, None, None, None]
    assert out.shape == (c_out, n, h, w)
    assert jnp.allclose(out, ref, atol=1e-5, rtol=1e-5)

    print("KERNEL_OK")
</pallas_src>

<mosaic_0001>
module attributes {stable_mosaic.version = 11 : i64} {
  func.func @_linear_kernel(%arg0: i32, %arg1: memref<4x512xf32, #tpu.memory_space<vmem>>, %arg2: memref<8x4xf32, #tpu.memory_space<vmem>>, %arg3: memref<8x1xf32, #tpu.memory_space<vmem>>, %arg4: memref<8x512xf32, #tpu.memory_space<vmem>>) attributes {dimension_semantics = [#tpu.dimension_semantics<parallel>], iteration_bounds = array<i64: 1>, scalar_prefetch = 0 : i64, scratch_operands = 0 : i64, tpu.core_type = #tpu.core_type<tc>, window_params = [{transform_indices = @transform_0, window_bounds = array<i64: 4, 512>}, {pipeline_mode = #tpu.pipeline_mode<synchronous>, transform_indices = @transform_1, window_bounds = array<i64: 8, 4>}, {pipeline_mode = #tpu.pipeline_mode<synchronous>, transform_indices = @transform_2, window_bounds = array<i64: 8, 1>}, {transform_indices = @transform_3, window_bounds = array<i64: 8, 512>}]} {
    %c0 = arith.constant 0 : index
    %c0_0 = arith.constant 0 : index
    %0 = vector.load %arg2[%c0, %c0_0] : memref<8x4xf32, #tpu.memory_space<vmem>>, vector<8x4xf32>
    %c0_1 = arith.constant 0 : index
    %c0_2 = arith.constant 0 : index
    %1 = vector.load %arg1[%c0_1, %c0_2] : memref<4x512xf32, #tpu.memory_space<vmem>>, vector<4x512xf32>
    %cst = arith.constant dense<0.000000e+00> : vector<8x512xf32>
    %2 = tpu.matmul %0, %1, %cst {dimension_numbers = #tpu.dot_dimension_numbers<[1], [0], [0], [1], [0, 0, 1, 1], [], []>} : vector<8x4xf32>, vector<4x512xf32>, vector<8x512xf32> -> vector<8x512xf32>
    %c0_3 = arith.constant 0 : index
    %c0_4 = arith.constant 0 : index
    %3 = vector.load %arg3[%c0_3, %c0_4] : memref<8x1xf32, #tpu.memory_space<vmem>>, vector<8x1xf32>
    %4 = vector.broadcast %3 : vector<8x1xf32> to vector<8x512xf32>
    %5 = arith.addf %2, %4 : vector<8x512xf32>
    %c0_5 = arith.constant 0 : index
    %c0_6 = arith.constant 0 : index
    %6 = vector.load %arg4[%c0_5, %c0_6] : memref<8x512xf32, #tpu.memory_space<vmem>>, vector<8x512xf32>
    tpu.vector_store %arg4[%c0_5, %c0_6], %5 {strides = array<i32>} : memref<8x512xf32, #tpu.memory_space<vmem>>, vector<8x512xf32>,
    return
  }
  func.func @transform_0(%arg0: i32) -> (i32, i32) {
    %c0_i32 = arith.constant 0 : i32
    %c0_i32_0 = arith.constant 0 : i32
    return %c0_i32, %arg0 : i32, i32
  }
  func.func @transform_1(%arg0: i32) -> (i32, i32) {
    %c0_i32 = arith.constant 0 : i32
    %c0_i32_0 = arith.constant 0 : i32
    %c0_i32_1 = arith.constant 0 : i32
    return %c0_i32, %c0_i32_0 : i32, i32
  }
  func.func @transform_2(%arg0: i32) -> (i32, i32) {
    %c0_i32 = arith.constant 0 : i32
    %c0_i32_0 = arith.constant 0 : i32
    %c0_i32_1 = arith.constant 0 : i32
    return %c0_i32, %c0_i32_0 : i32, i32
  }
  func.func @transform_3(%arg0: i32) -> (i32, i32) {
    %c0_i32 = arith.constant 0 : i32
    %c0_i32_0 = arith.constant 0 : i32
    return %c0_i32, %arg0 : i32, i32
  }
}

</mosaic_0001>

<llo_original>
// kernel: tpu_custom_call.1
$region0: #{tpu_custom_call.1}
  #allocation0 [shape = 'u32[]', space=smem, size = 0x4, offset = 0x4, fixed_abs, tag = 'smem constant byte address 0x4 - core index']
  #allocation1 [shape = 'u32[144,128]{1,0:T(1,128)}', space=vmem, size = 0x12000, scoped, tag = 'internal scratch']
  %s0 = inlined_call_operand.vmem [shape: f32[4,512], index: 0, kind: input, shape index: {}]
  %s1 = inlined_call_operand.vmem [shape: f32[8,4], index: 1, kind: input, shape index: {}]
  %s2 = inlined_call_operand.vmem [shape: f32[8,1], index: 2, kind: input, shape index: {}]
  %s3 = inlined_call_operand.hbm [shape: f32[8,512], index: 3, kind: output, shape index: {}]
  %s4 = sld [smem:[#allocation0]]
  $region22: #{tpu_custom_call.1} parent=0
    _
  %s6 = ssub.s32 1, %s4
  %s7 = scalar_select 0, %s6, %s4
  $region1: #{tpu_custom_call.1} parent=0
    #allocation2 [shape = 'u8[16384]{0}', space=vmem, size = 0x4000, scoped, tag = 'output window, operand 0, single buffered']
    #allocation3 [shape = 's32[1]{0}', space=sflag, size = 0x4, scoped, tag = 'scoped memory for tpu_custom_call.1']
    %8 = vsyncpa [#allocation3], 0
    // Predicated region
    $region2: #{tpu_custom_call.1} parent=1 // pred_check
      _
    $region3: #{tpu_custom_call.1} parent=1 // pred_check_branch
      %10 = sbr.rel (0) target = $region5
    $region4: #{tpu_custom_call.1} parent=1 // pred_region
      _
    $region5: #{tpu_custom_call.1} parent=1 // pred_fallthru
      _
    // Predicated region
    $region6: #{tpu_custom_call.1} parent=1 // pred_check
      _
    $region7: #{tpu_custom_call.1} parent=1 // pred_check_branch
      %12 = sbr.rel (0) target = $region9
    $region8: #{tpu_custom_call.1} parent=1 // pred_region
      _
    $region9: #{tpu_custom_call.1} parent=1 // pred_fallthru
      _
    // Predicated region
    $region10: #{tpu_custom_call.1} parent=1 // pred_check
      _
    $region11: #{tpu_custom_call.1} parent=1 // pred_check_branch
      %14 = sbr.rel (0) target = $region13
    $region12: #{tpu_custom_call.1} parent=1 // pred_region
      _
    $region13: #{tpu_custom_call.1} parent=1 // pred_fallthru
      _
    %v15 = vld [vmem:[%s1] sm:$0xff]
    %v16 = vld [vmem:[%s0] sm:$0xff]
    %v17 = vld [vmem:[%s0 + $0x8] sm:$0xff]
    %v18 = vld [vmem:[%s2] sm:$0xff]
    %20 = vset.pattern.permute.xlu0 0
    %21 = vperm.xlu0 %20, %v18
    %v22 = vpop.permute.xlu0 %21
    %v26 = vcombine.high %v16, %v16
    %v27 = vcombine.high %v17, %v17
    %vm28 = vcmask 31744
    %v30 = vsel %vm28, %v15, 0
    %vm32 = vcmask 1043456
    %v33 = vsel %vm32, %v16, 0
    %v35 = vsel %vm32, %v26, 0
    %v37 = vsel %vm32, %v17, 0
    %v39 = vsel %vm32, %v27, 0
    %41 = vmatprep.subr.mxu0 0.0
    %42 = vmatpush1.msra.mxu0 0.0
    %43 = vmatprep.subr.mxu0 0.0
    %44 = vmatpush1.msra.mxu0 0.0
    %45 = vmatprep.subr.mxu0 0.0
    %46 = vmatpush1.msra.mxu0 0.0
    %47 = vmatprep.subr.mxu0 0.0
    %48 = vmatpush1.msra.mxu0 0.0
    %49 = vmatprep.subr.mxu0 0.0
    %50 = vmatpush1.msra.mxu0 0.0
    %51 = vmatprep.subr.mxu0 0.0
    %52 = vmatpush1.msra.mxu0 0.0
    %53 = vmatprep.subr.mxu0 0.0
    %54 = vmatpush1.msra.mxu0 0.0
    %55 = vmatprep.subr.mxu0 0.0
    %56 = vmatpush1.msra.mxu0 0.0
    %57 = vmatprep.subr.mxu0 0.0
    %58 = vmatpush1.msra.mxu0 0.0
    %59 = vmatprep.subr.mxu0 0.0
    %60 = vmatpush1.msra.mxu0 0.0
    %61 = vmatprep.subr.mxu0 0.0
    %62 = vmatpush1.msra.mxu0 0.0
    %63 = vmatprep.subr.mxu0 0.0
    %64 = vmatpush1.msra.mxu0 0.0
    %65 = vmatprep.subr.mxu0 0.0
    %66 = vmatpush1.msra.mxu0 0.0
    %67 = vmatprep.subr.mxu0 0.0
    %68 = vmatpush1.msra.mxu0 0.0
    %69 = vmatprep.subr.mxu0 0.0
    %70 = vmatpush1.msra.mxu0 0.0
    %71 = vmatprep.subr.mxu0 %v35
    %72 = vmatpush1.msra.mxu0 %v33
    %73 = vmatprep.subr.mxu0 0.0
    %74 = vmatpush2.msra.mxu0 0.0
    %75 = vmatprep.subr.mxu0 0.0
    %76 = vmatpush2.msra.mxu0 0.0
    %77 = vmatprep.subr.mxu0 0.0
    %78 = vmatpush2.msra.mxu0 0.0
    %79 = vmatprep.subr.mxu0 0.0
    %80 = vmatpush2.msra.mxu0 0.0
    %81 = vmatprep.subr.mxu0 0.0
    %82 = vmatpush2.msra.mxu0 0.0
    %83 = vmatprep.subr.mxu0 0.0
    %84 = vmatpush2.msra.mxu0 0.0
    %85 = vmatprep.subr.mxu0 0.0
    %86 = vmatpush2.msra.mxu0 0.0
    %87 = vmatprep.subr.mxu0 0.0
    %88 = vmatpush2.msra.mxu0 0.0
    %89 = vmatprep.subr.mxu0 0.0
    %90 = vmatpush2.msra.mxu0 0.0
    %91 = vmatprep.subr.mxu0 0.0
    %92 = vmatpush2.msra.mxu0 0.0
    %93 = vmatprep.subr.mxu0 0.0
    %94 = vmatpush2.msra.mxu0 0.0
    %95 = vmatprep.subr.mxu0 0.0
    %96 = vmatpush2.msra.mxu0 0.0
    %97 = vmatprep.subr.mxu0 0.0
    %98 = vmatpush2.msra.mxu0 0.0
    %99 = vmatprep.subr.mxu0 0.0
    %100 = vmatpush2.msra.mxu0 0.0
    %101 = vmatprep.subr.mxu0 0.0
    %102 = vmatpush2.msra.mxu0 0.0
    %103 = vmatprep.subr.mxu0 0.0
    %104 = vmatpush2.msra.mxu0 0.0
    %105 = vmatprep.mubr.f32.mxu0 0.0
    %106 = vmatmul.mubr.f32.gmra.mxu0 %v30
    %v107 = vpop.f32.mrf.mxu0
    %v108 = vadd.f32 %v22, %v107
    %v109 = vpop.f32.mrf.mxu0
    %v110 = vadd.f32 %v22, %v109
    %111 = vdwg.mxu0
    %112 = vmatprep.subr.mxu0 0.0
    %113 = vmatpush1.msra.mxu0 0.0
    %114 = vmatprep.subr.mxu0 0.0
    %115 = vmatpush1.msra.mxu0 0.0
    %116 = vmatprep.subr.mxu0 0.0
    %117 = vmatpush1.msra.mxu0 0.0
    %118 = vmatprep.subr.mxu0 0.0
    %119 = vmatpush1.msra.mxu0 0.0
    %120 = vmatprep.subr.mxu0 0.0
    %121 = vmatpush1.msra.mxu0 0.0
    %122 = vmatprep.subr.mxu0 0.0
    %123 = vmatpush1.msra.mxu0 0.0
    %124 = vmatprep.subr.mxu0 0.0
    %125 = vmatpush1.msra.mxu0 0.0
    %126 = vmatprep.subr.mxu0 0.0
    %127 = vmatpush1.msra.mxu0 0.0
    %128 = vmatprep.subr.mxu0 0.0
    %129 = vmatpush1.msra.mxu0 0.0
    %130 = vmatprep.subr.mxu0 0.0
    %131 = vmatpush1.msra.mxu0 0.0
    %132 = vmatprep.subr.mxu0 0.0
    %133 = vmatpush1.msra.mxu0 0.0
    %134 = vmatprep.subr.mxu0 0.0
    %135 = vmatpush1.msra.mxu0 0.0
    %136 = vmatprep.subr.mxu0 0.0
    %137 = vmatpush1.msra.mxu0 0.0
    %138 = vmatprep.subr.mxu0 0.0
    %139 = vmatpush1.msra.mxu0 0.0
    %140 = vmatprep.subr.mxu0 0.0
    %141 = vmatpush1.msra.mxu0 0.0
    %142 = vmatprep.subr.mxu0 %v39
    %143 = vmatpush1.msra.mxu0 %v37
    %144 = vmatprep.subr.mxu0 0.0
    %145 = vmatpush2.msra.mxu0 0.0
    %146 = vmatprep.subr.mxu0 0.0
    %147 = vmatpush2.msra.mxu0 0.0
    %148 = vmatprep.subr.mxu0 0.0
    %149 = vmatpush2.msra.mxu0 0.0
    %150 = vmatprep.subr.mxu0 0.0
    %151 = vmatpush2.msra.mxu0 0.0
    %152 = vmatprep.subr.mxu0 0.0
    %153 = vmatpush2.msra.mxu0 0.0
    %154 = vmatprep.subr.mxu0 0.0
    %155 = vmatpush2.msra.mxu0 0.0
    %156 = vmatprep.subr.mxu0 0.0
    %157 = vmatpush2.msra.mxu0 0.0
    %158 = vmatprep.subr.mxu0 0.0
    %159 = vmatpush2.msra.mxu0 0.0
    %160 = vmatprep.subr.mxu0 0.0
    %161 = vmatpush2.msra.mxu0 0.0
    %162 = vmatprep.subr.mxu0 0.0
    %163 = vmatpush2.msra.mxu0 0.0
    %164 = vmatprep.subr.mxu0 0.0
    %165 = vmatpush2.msra.mxu0 0.0
    %166 = vmatprep.subr.mxu0 0.0
    %167 = vmatpush2.msra.mxu0 0.0
    %168 = vmatprep.subr.mxu0 0.0
    %169 = vmatpush2.msra.mxu0 0.0
    %170 = vmatprep.subr.mxu0 0.0
    %171 = vmatpush2.msra.mxu0 0.0
    %172 = vmatprep.subr.mxu0 0.0
    %173 = vmatpush2.msra.mxu0 0.0
    %174 = vmatprep.subr.mxu0 0.0
    %175 = vmatpush2.msra.mxu0 0.0
    %176 = vmatprep.mubr.f32.mxu0 0.0
    %177 = vmatmul.mubr.f32.gmra.mxu0 %v30
    %v178 = vpop.f32.mrf.mxu0
    %v179 = vadd.f32 %v22, %v178
    %v180 = vpop.f32.mrf.mxu0
    %v181 = vadd.f32 %v22, %v180
    %182 = vdwg.mxu0
    %183 = vst [vmem:[#allocation2] sm:$0xff] %v108
    %184 = vst [vmem:[#allocation2 + $0x8] sm:$0xff] %v110
    %185 = vst [vmem:[#allocation2 + $0x10] sm:$0xff] %v179
    %186 = vst [vmem:[#allocation2 + $0x18] sm:$0xff] %v181
    // Predicated region
    $region14: #{tpu_custom_call.1} parent=1 // pred_check
      _
    $region15: #{tpu_custom_call.1} parent=1 // pred_check_branch
      %188 = sbr.rel (0) target = $region17
    $region16: #{tpu_custom_call.1} parent=1 // pred_region
      %s190 = ssub.s32 512, 512
      %191 = vsyncadd [#allocation3], %s190
      %s193 = sshll.u32 [#allocation2], 4
      %s194 = int_to_ptr.vmem [resolvable:$true] %s193
      %196 = dma.vmem_to_hbm [thread:$0]  %s194, 512, %s3, [#allocation3]
    $region17: #{tpu_custom_call.1} parent=1 // pred_fallthru
      _
    // Predicated region
    $region18: #{tpu_custom_call.1} parent=1 // pred_check
      _
    $region19: #{tpu_custom_call.1} parent=1 // pred_check_branch
      %198 = sbr.rel (0) target = $region21
    $region20: #{tpu_custom_call.1} parent=1 // pred_region
      %199 = dma.done [#allocation3], 512
    $region21: #{tpu_custom_call.1} parent=1 // pred_fallthru
      _
    %200 = vsyncpa [#allocation3], 1

</llo_original>
